<compile_context>
chip_gen: v6e
topology: v6e:2x2x1
jax: 0.10.0
libtpu: 0.0.40
codegen_flags: <defaults>
</compile_context>

<pallas_src>
import jax
import jax.numpy as jnp
from jax.experimental import pallas as pl
from jax.experimental.pallas import tpu as pltpu

IN_FEATURES = 1401
HIDDEN = 192
K_PAD = 1408            # 1401 rounded up to a multiple of 128 (lane-aligned K)
DEFAULT_TILE_B = 512    # fits the scoped-VMEM default on v5e / v6e / v7x


def _round_up(n, m):
    return ((n + m - 1) // m) * m


def mlp_kernel(x_ref, w1_ref, b1_ref, w2_ref, b2_ref, o_ref):
    # Layer 1 on the MXU: (TILE_B, K_PAD)bf16 @ (K_PAD, HIDDEN)bf16 -> f32 acc.
    h = jnp.dot(x_ref[...], w1_ref[...], preferred_element_type=jnp.float32)
    h = jnp.maximum(h + b1_ref[...], 0.0)                      # bias + ReLU (f32, VPU)
    # Layer 2 (out_features == 1): VPU multiply + lane reduce instead of an
    # N=1 MXU matmul.  w2_ref is the (1, HIDDEN) weight row.
    out = jnp.sum(h * w2_ref[...], axis=-1, keepdims=True)     # (TILE_B, 1)
    o_ref[...] = jnp.maximum(out + b2_ref[0], 0.0)


def single_metabolite_forward(x, w1, b1, w2, b2, *, tile_b=DEFAULT_TILE_B,
                              compute_dtype=jnp.bfloat16):
    B, K = x.shape
    assert K == IN_FEATURES and w1.shape == (IN_FEATURES, HIDDEN)

    # Zero-pad K: 1401 -> 1408.  Padded x cols / W1 rows contribute exactly 0.
    x_p = jnp.pad(x, ((0, 0), (0, K_PAD - K))).astype(compute_dtype)
    w1_p = jnp.pad(w1, ((0, K_PAD - K), (0, 0))).astype(compute_dtype)

    # Batch tiling: pad B up to a multiple of the tile so the grid is exact.
    tb = min(tile_b, _round_up(B, 16))
    b_pad = _round_up(B, tb)
    if b_pad != B:
        x_p = jnp.pad(x_p, ((0, b_pad - B), (0, 0)))

    b1_row = b1.reshape(1, HIDDEN).astype(jnp.float32)
    w2_row = w2.reshape(1, HIDDEN).astype(jnp.float32)
    b2_s = b2.reshape(1).astype(jnp.float32)

    out = pl.pallas_call(
        mlp_kernel,
        out_shape=jax.ShapeDtypeStruct((b_pad, 1), jnp.float32),
        grid=(b_pad // tb,),
        in_specs=[
            pl.BlockSpec((tb, K_PAD), lambda i: (i, 0)),         # x: streamed
            pl.BlockSpec((K_PAD, HIDDEN), lambda i: (0, 0)),     # W1: resident
            pl.BlockSpec((1, HIDDEN), lambda i: (0, 0)),         # b1: resident
            pl.BlockSpec((1, HIDDEN), lambda i: (0, 0)),         # w2 row: resident
            pl.BlockSpec(memory_space=pltpu.MemorySpace.SMEM),   # b2 scalar
        ],
        out_specs=pl.BlockSpec((tb, 1), lambda i: (i, 0)),
        compiler_params=pltpu.CompilerParams(
            dimension_semantics=("parallel",),   # v7x: shard batch over 2 TCs
            vmem_limit_bytes=32 * 1024 * 1024,   # safe on v5e / v6e / v7x
        ),
    )(x_p, w1_p, b1_row, w2_row, b2_s)

    # torch .squeeze(): (B, 1) -> (B,)  (scalar if B == 1)
    return jnp.squeeze(out[:B])


def init_params(key):
    # PyTorch nn.Linear default init: U(-1/sqrt(fan_in), 1/sqrt(fan_in))
    k1, k2, k3, k4 = jax.random.split(key, 4)
    bound1 = 1.0 / jnp.sqrt(IN_FEATURES)
    bound2 = 1.0 / jnp.sqrt(HIDDEN)
    w1 = jax.random.uniform(k1, (IN_FEATURES, HIDDEN), jnp.float32, -bound1, bound1)
    b1 = jax.random.uniform(k2, (HIDDEN,), jnp.float32, -bound1, bound1)
    w2 = jax.random.uniform(k3, (HIDDEN, 1), jnp.float32, -bound2, bound2)
    b2 = jax.random.uniform(k4, (1,), jnp.float32, -bound2, bound2)
    return w1, b1, w2, b2


def _reference(x, w1, b1, w2, b2, compute_dtype=jnp.bfloat16):
    # Same input quantization as the kernel (bf16 x / W1), math in f32.
    xq = x.astype(compute_dtype).astype(jnp.float32)
    w1q = w1.astype(compute_dtype).astype(jnp.float32)
    h = jnp.maximum(xq @ w1q + b1, 0.0)
    return jnp.squeeze(jnp.maximum(h @ w2 + b2, 0.0))


if __name__ == "__main__":
    key = jax.random.PRNGKey(0)
    kx, kp = jax.random.split(key)
    w1, b1, w2, b2 = init_params(kp)

    # Small batch (single tile, batch padded up to the tile).
    B = 4
    x = jax.random.normal(kx, (B, IN_FEATURES), dtype=jnp.float32)
    y = jax.block_until_ready(single_metabolite_forward(x, w1, b1, w2, b2))
    assert y.shape == (B,)
    assert jnp.allclose(y, _reference(x, w1, b1, w2, b2), atol=1e-4, rtol=1e-4)
    # Loose sanity check against the pure-f32 reference (bf16 input error ~1e-3).
    h32 = jnp.maximum(x @ w1 + b1, 0.0)
    y32 = jnp.squeeze(jnp.maximum(h32 @ w2 + b2, 0.0))
    assert jnp.allclose(y, y32, atol=3e-2)

    # Larger batch exercising the multi-step grid (3 tiles of 128 rows + padding).
    B2 = 300
    x2 = jax.random.normal(kx, (B2, IN_FEATURES), dtype=jnp.float32)
    y2 = jax.block_until_ready(
        single_metabolite_forward(x2, w1, b1, w2, b2, tile_b=128))
    assert y2.shape == (B2,)
    assert jnp.allclose(y2, _reference(x2, w1, b1, w2, b2), atol=1e-4, rtol=1e-4)

    print("KERNEL_OK")
</pallas_src>

<mosaic_0001>
module attributes {stable_mosaic.version = 11 : i64} {
  func.func @mlp_kernel(%arg0: i32, %arg1: memref<16x1408xbf16, #tpu.memory_space<vmem>>, %arg2: memref<1408x192xbf16, #tpu.memory_space<vmem>>, %arg3: memref<1x192xf32, #tpu.memory_space<vmem>>, %arg4: memref<1x192xf32, #tpu.memory_space<vmem>>, %arg5: memref<1xf32, #tpu.memory_space<smem>>, %arg6: memref<16x1xf32, #tpu.memory_space<vmem>>) attributes {dimension_semantics = [#tpu.dimension_semantics<parallel>], iteration_bounds = array<i64: 1>, scalar_prefetch = 0 : i64, scratch_operands = 0 : i64, tpu.core_type = #tpu.core_type<tc>, window_params = [{transform_indices = @transform_0, window_bounds = array<i64: 16, 1408>}, {pipeline_mode = #tpu.pipeline_mode<synchronous>, transform_indices = @transform_1, window_bounds = array<i64: 1408, 192>}, {pipeline_mode = #tpu.pipeline_mode<synchronous>, transform_indices = @transform_2, window_bounds = array<i64: 1, 192>}, {pipeline_mode = #tpu.pipeline_mode<synchronous>, transform_indices = @transform_3, window_bounds = array<i64: 1, 192>}, {transform_indices = @transform_4, window_bounds = array<i64: 1>}, {transform_indices = @transform_5, window_bounds = array<i64: 16, 1>}]} {
    %c0 = arith.constant 0 : index
    %c0_0 = arith.constant 0 : index
    %0 = vector.load %arg1[%c0, %c0_0] : memref<16x1408xbf16, #tpu.memory_space<vmem>>, vector<16x1408xbf16>
    %c0_1 = arith.constant 0 : index
    %c0_2 = arith.constant 0 : index
    %1 = vector.load %arg2[%c0_1, %c0_2] : memref<1408x192xbf16, #tpu.memory_space<vmem>>, vector<1408x192xbf16>
    %cst = arith.constant dense<0.000000e+00> : vector<16x192xf32>
    %2 = tpu.matmul %0, %1, %cst {dimension_numbers = #tpu.dot_dimension_numbers<[1], [0], [0], [1], [0, 0, 1, 1], [], []>} : vector<16x1408xbf16>, vector<1408x192xbf16>, vector<16x192xf32> -> vector<16x192xf32>
    %c0_3 = arith.constant 0 : index
    %c0_4 = arith.constant 0 : index
    %3 = vector.load %arg3[%c0_3, %c0_4] : memref<1x192xf32, #tpu.memory_space<vmem>>, vector<1x192xf32>
    %4 = vector.broadcast %3 : vector<1x192xf32> to vector<16x192xf32>
    %5 = arith.addf %2, %4 : vector<16x192xf32>
    %cst_5 = arith.constant 0.000000e+00 : f32
    %6 = vector.broadcast %cst_5 : f32 to vector<16x192xf32>
    %7 = arith.maximumf %5, %6 : vector<16x192xf32>
    %c0_6 = arith.constant 0 : index
    %c0_7 = arith.constant 0 : index
    %8 = vector.load %arg4[%c0_6, %c0_7] : memref<1x192xf32, #tpu.memory_space<vmem>>, vector<1x192xf32>
    %9 = vector.broadcast %8 : vector<1x192xf32> to vector<16x192xf32>
    %10 = arith.mulf %7, %9 : vector<16x192xf32>
    %cst_8 = arith.constant dense<0.000000e+00> : vector<16xf32>
    %11 = vector.multi_reduction <add>, %10, %cst_8 [1] : vector<16x192xf32> to vector<16xf32>
    %12 = vector.shape_cast %11 : vector<16xf32> to vector<16x1xf32>
    %c0_9 = arith.constant 0 : index
    %13 = memref.load %arg5[%c0_9] : memref<1xf32, #tpu.memory_space<smem>>
    %14 = vector.broadcast %13 : f32 to vector<16x1xf32>
    %15 = arith.addf %12, %14 : vector<16x1xf32>
    %cst_10 = arith.constant 0.000000e+00 : f32
    %16 = vector.broadcast %cst_10 : f32 to vector<16x1xf32>
    %17 = arith.maximumf %15, %16 : vector<16x1xf32>
    %c0_11 = arith.constant 0 : index
    %c0_12 = arith.constant 0 : index
    %18 = vector.load %arg6[%c0_11, %c0_12] : memref<16x1xf32, #tpu.memory_space<vmem>>, vector<16x1xf32>
    tpu.vector_store %arg6[%c0_11, %c0_12], %17 {strides = array<i32>} : memref<16x1xf32, #tpu.memory_space<vmem>>, vector<16x1xf32>,
    return
  }
  func.func @transform_0(%arg0: i32) -> (i32, i32) {
    %c0_i32 = arith.constant 0 : i32
    %c0_i32_0 = arith.constant 0 : i32
    return %arg0, %c0_i32 : i32, i32
  }
  func.func @transform_1(%arg0: i32) -> (i32, i32) {
    %c0_i32 = arith.constant 0 : i32
    %c0_i32_0 = arith.constant 0 : i32
    %c0_i32_1 = arith.constant 0 : i32
    return %c0_i32, %c0_i32_0 : i32, i32
  }
  func.func @transform_2(%arg0: i32) -> (i32, i32) {
    %c0_i32 = arith.constant 0 : i32
    %c0_i32_0 = arith.constant 0 : i32
    %c0_i32_1 = arith.constant 0 : i32
    return %c0_i32, %c0_i32_0 : i32, i32
  }
  func.func @transform_3(%arg0: i32) -> (i32, i32) {
    %c0_i32 = arith.constant 0 : i32
    %c0_i32_0 = arith.constant 0 : i32
    %c0_i32_1 = arith.constant 0 : i32
    return %c0_i32, %c0_i32_0 : i32, i32
  }
  func.func @transform_4(%arg0: i32) -> i32 {
    %c0_i32 = arith.constant 0 : i32
    %c0_i32_0 = arith.constant 0 : i32
    return %c0_i32 : i32
  }
  func.func @transform_5(%arg0: i32) -> (i32, i32) {
    %c0_i32 = arith.constant 0 : i32
    %c0_i32_0 = arith.constant 0 : i32
    return %arg0, %c0_i32 : i32, i32
  }
}

</mosaic_0001>

<llo_original>
// kernel: tpu_custom_call.1
$region0: #{tpu_custom_call.1}
  #allocation0 [shape = 'u32[]', space=smem, size = 0x4, offset = 0x4, fixed_abs, tag = 'smem constant byte address 0x4 - core index']
  #allocation1 [shape = 'u32[144,128]{1,0:T(1,128)}', space=vmem, size = 0x12000, scoped, tag = 'internal scratch']
  #allocation2 [shape = 'f32[1]{0:T(128)S(6)}', space=smem, size = 0x200, scoped, tag = 'scoped memory for tpu_custom_call.1']
  %s0 = inlined_call_operand.vmem [shape: bf16[16,1408], index: 0, kind: input, shape index: {}]
  %s1 = inlined_call_operand.vmem [shape: bf16[1408,192], index: 1, kind: input, shape index: {}]
  %s2 = inlined_call_operand.vmem [shape: f32[1,192], index: 2, kind: input, shape index: {}]
  %s3 = inlined_call_operand.vmem [shape: f32[1,192], index: 3, kind: input, shape index: {}]
  %s4 = inlined_call_operand.<no memory space> [shape: f32[1], index: 4, kind: input, shape index: {}]
  %s5 = inlined_call_operand.vmem [shape: f32[16,1], index: 5, kind: output, shape index: {}]
  %s6 = sld [smem:[#allocation0]]
  $region30: #{tpu_custom_call.1} parent=0
    _
  %s8 = ssub.s32 1, %s6
  %s9 = scalar_select 0, %s8, %s6
  %10 = sst [smem:[#allocation2]] %s4
  // Predicated region
  $region2: #{tpu_custom_call.1} parent=0 // pred_check
    _
  $region3: #{tpu_custom_call.1} parent=0 // pred_check_branch
    %12 = sbr.rel (0) target = $region5
  $region4: #{tpu_custom_call.1} parent=0 // pred_region
    _
  $region5: #{tpu_custom_call.1} parent=0 // pred_fallthru
    _
  // Predicated region
  $region6: #{tpu_custom_call.1} parent=0 // pred_check
    _
  $region7: #{tpu_custom_call.1} parent=0 // pred_check_branch
    %14 = sbr.rel (0) target = $region9
  $region8: #{tpu_custom_call.1} parent=0 // pred_region
    _
  $region9: #{tpu_custom_call.1} parent=0 // pred_fallthru
    _
  // Predicated region
  $region10: #{tpu_custom_call.1} parent=0 // pred_check
    _
  $region11: #{tpu_custom_call.1} parent=0 // pred_check_branch
    %16 = sbr.rel (0) target = $region13
  $region12: #{tpu_custom_call.1} parent=0 // pred_region
    _
  $region13: #{tpu_custom_call.1} parent=0 // pred_fallthru
    _
  // Predicated region
  $region14: #{tpu_custom_call.1} parent=0 // pred_check
    _
  $region15: #{tpu_custom_call.1} parent=0 // pred_check_branch
    %18 = sbr.rel (0) target = $region17
  $region16: #{tpu_custom_call.1} parent=0 // pred_region
    _
  $region17: #{tpu_custom_call.1} parent=0 // pred_fallthru
    _
  // Predicated region
  $region18: #{tpu_custom_call.1} parent=0 // pred_check
    _
  $region19: #{tpu_custom_call.1} parent=0 // pred_check_branch
    %20 = sbr.rel (0) target = $region21
  $region20: #{tpu_custom_call.1} parent=0 // pred_region
    _
  $region21: #{tpu_custom_call.1} parent=0 // pred_fallthru
    _
  %v22 = vld [vmem:[%s0] sm:$0xff]
  %v23 = vld [vmem:[%s0 + $0x8] sm:$0xff]
  %v24 = vld [vmem:[%s0 + $0x10] sm:$0xff]
  %v25 = vld [vmem:[%s0 + $0x18] sm:$0xff]
  %v26 = vld [vmem:[%s0 + $0x20] sm:$0xff]
  %v27 = vld [vmem:[%s0 + $0x28] sm:$0xf]
  %v28 = vld [vmem:[%s0 + $0x2c] sm:$0xff]
  %v29 = vld [vmem:[%s0 + $0x34] sm:$0xff]
  %v30 = vld [vmem:[%s0 + $0x3c] sm:$0xff]
  %v31 = vld [vmem:[%s0 + $0x44] sm:$0xff]
  %v32 = vld [vmem:[%s0 + $0x4c] sm:$0xff]
  %v33 = vld [vmem:[%s0 + $0x54] sm:$0xf]
  %v34 = vld [vmem:[%s1] sm:$0xff]
  %v35 = vld [vmem:[%s1 + $0x8] sm:$0xff]
  %v36 = vld [vmem:[%s1 + $0x10] sm:$0xff]
  %v37 = vld [vmem:[%s1 + $0x18] sm:$0xff]
  %v38 = vld [vmem:[%s1 + $0x20] sm:$0xff]
  %v39 = vld [vmem:[%s1 + $0x28] sm:$0xff]
  %v40 = vld [vmem:[%s1 + $0x30] sm:$0xff]
  %v41 = vld [vmem:[%s1 + $0x38] sm:$0xff]
  %v42 = vld [vmem:[%s1 + $0x40] sm:$0xff]
  %v43 = vld [vmem:[%s1 + $0x48] sm:$0xff]
  %v44 = vld [vmem:[%s1 + $0x50] sm:$0xff]
  %v45 = vld [vmem:[%s1 + $0x58] sm:$0xff]
  %v46 = vld [vmem:[%s1 + $0x60] sm:$0xff]
  %v47 = vld [vmem:[%s1 + $0x68] sm:$0xff]
  %v48 = vld [vmem:[%s1 + $0x70] sm:$0xff]
  %v49 = vld [vmem:[%s1 + $0x78] sm:$0xff]
  %v50 = vld [vmem:[%s1 + $0x80] sm:$0xff]
  %v51 = vld [vmem:[%s1 + $0x88] sm:$0xff]
  %v52 = vld [vmem:[%s1 + $0x90] sm:$0xff]
  %v53 = vld [vmem:[%s1 + $0x98] sm:$0xff]
  %v54 = vld [vmem:[%s1 + $0xa0] sm:$0xff]
  %v55 = vld [vmem:[%s1 + $0xa8] sm:$0xff]
  %v56 = vld [vmem:[%s1 + $0xb0] sm:$0xff]
  %v57 = vld [vmem:[%s1 + $0xb8] sm:$0xff]
  %v58 = vld [vmem:[%s1 + $0xc0] sm:$0xff]
  %v59 = vld [vmem:[%s1 + $0xc8] sm:$0xff]
  %v60 = vld [vmem:[%s1 + $0xd0] sm:$0xff]
  %v61 = vld [vmem:[%s1 + $0xd8] sm:$0xff]
  %v62 = vld [vmem:[%s1 + $0xe0] sm:$0xff]
  %v63 = vld [vmem:[%s1 + $0xe8] sm:$0xff]
  %v64 = vld [vmem:[%s1 + $0xf0] sm:$0xff]
  %v65 = vld [vmem:[%s1 + $0xf8] sm:$0xff]
  %v66 = vld [vmem:[%s1 + $0x100] sm:$0xff]
  %v67 = vld [vmem:[%s1 + $0x108] sm:$0xff]
  %v68 = vld [vmem:[%s1 + $0x110] sm:$0xff]
  %v69 = vld [vmem:[%s1 + $0x118] sm:$0xff]
  %v70 = vld [vmem:[%s1 + $0x120] sm:$0xff]
  %v71 = vld [vmem:[%s1 + $0x128] sm:$0xff]
  %v72 = vld [vmem:[%s1 + $0x130] sm:$0xff]
  %v73 = vld [vmem:[%s1 + $0x138] sm:$0xff]
  %v74 = vld [vmem:[%s1 + $0x140] sm:$0xff]
  %v75 = vld [vmem:[%s1 + $0x148] sm:$0xff]
  %v76 = vld [vmem:[%s1 + $0x150] sm:$0xff]
  %v77 = vld [vmem:[%s1 + $0x158] sm:$0xff]
  %v78 = vld [vmem:[%s1 + $0x160] sm:$0xff]
  %v79 = vld [vmem:[%s1 + $0x168] sm:$0xff]
  %v80 = vld [vmem:[%s1 + $0x170] sm:$0xff]
  %v81 = vld [vmem:[%s1 + $0x178] sm:$0xff]
  %v82 = vld [vmem:[%s1 + $0x180] sm:$0xff]
  %v83 = vld [vmem:[%s1 + $0x188] sm:$0xff]
  %v84 = vld [vmem:[%s1 + $0x190] sm:$0xff]
  %v85 = vld [vmem:[%s1 + $0x198] sm:$0xff]
  %v86 = vld [vmem:[%s1 + $0x1a0] sm:$0xff]
  %v87 = vld [vmem:[%s1 + $0x1a8] sm:$0xff]
  %v88 = vld [vmem:[%s1 + $0x1b0] sm:$0xff]
  %v89 = vld [vmem:[%s1 + $0x1b8] sm:$0xff]
  %v90 = vld [vmem:[%s1 + $0x1c0] sm:$0xff]
  %v91 = vld [vmem:[%s1 + $0x1c8] sm:$0xff]
  %v92 = vld [vmem:[%s1 + $0x1d0] sm:$0xff]
  %v93 = vld [vmem:[%s1 + $0x1d8] sm:$0xff]
  %v94 = vld [vmem:[%s1 + $0x1e0] sm:$0xff]
  %v95 = vld [vmem:[%s1 + $0x1e8] sm:$0xff]
  %v96 = vld [vmem:[%s1 + $0x1f0] sm:$0xff]
  %v97 = vld [vmem:[%s1 + $0x1f8] sm:$0xff]
  %v98 = vld [vmem:[%s1 + $0x200] sm:$0xff]
  %v99 = vld [vmem:[%s1 + $0x208] sm:$0xff]
  %v100 = vld [vmem:[%s1 + $0x210] sm:$0xff]
  %v101 = vld [vmem:[%s1 + $0x218] sm:$0xff]
  %v102 = vld [vmem:[%s1 + $0x220] sm:$0xff]
  %v103 = vld [vmem:[%s1 + $0x228] sm:$0xff]
  %v104 = vld [vmem:[%s1 + $0x230] sm:$0xff]
  %v105 = vld [vmem:[%s1 + $0x238] sm:$0xff]
  %v106 = vld [vmem:[%s1 + $0x240] sm:$0xff]
  %v107 = vld [vmem:[%s1 + $0x248] sm:$0xff]
  %v108 = vld [vmem:[%s1 + $0x250] sm:$0xff]
  %v109 = vld [vmem:[%s1 + $0x258] sm:$0xff]
  %v110 = vld [vmem:[%s1 + $0x260] sm:$0xff]
  %v111 = vld [vmem:[%s1 + $0x268] sm:$0xff]
  %v112 = vld [vmem:[%s1 + $0x270] sm:$0xff]
  %v113 = vld [vmem:[%s1 + $0x278] sm:$0xff]
  %v114 = vld [vmem:[%s1 + $0x280] sm:$0xff]
  %v115 = vld [vmem:[%s1 + $0x288] sm:$0xff]
  %v116 = vld [vmem:[%s1 + $0x290] sm:$0xff]
  %v117 = vld [vmem:[%s1 + $0x298] sm:$0xff]
  %v118 = vld [vmem:[%s1 + $0x2a0] sm:$0xff]
  %v119 = vld [vmem:[%s1 + $0x2a8] sm:$0xff]
  %v120 = vld [vmem:[%s1 + $0x2b0] sm:$0xff]
  %v121 = vld [vmem:[%s1 + $0x2b8] sm:$0xff]
  %v122 = vld [vmem:[%s1 + $0x2c0] sm:$0xff]
  %v123 = vld [vmem:[%s1 + $0x2c8] sm:$0xff]
  %v124 = vld [vmem:[%s1 + $0x2d0] sm:$0xff]
  %v125 = vld [vmem:[%s1 + $0x2d8] sm:$0xff]
  %v126 = vld [vmem:[%s1 + $0x2e0] sm:$0xff]
  %v127 = vld [vmem:[%s1 + $0x2e8] sm:$0xff]
  %v128 = vld [vmem:[%s1 + $0x2f0] sm:$0xff]
  %v129 = vld [vmem:[%s1 + $0x2f8] sm:$0xff]
  %v130 = vld [vmem:[%s1 + $0x300] sm:$0xff]
  %v131 = vld [vmem:[%s1 + $0x308] sm:$0xff]
  %v132 = vld [vmem:[%s1 + $0x310] sm:$0xff]
  %v133 = vld [vmem:[%s1 + $0x318] sm:$0xff]
  %v134 = vld [vmem:[%s1 + $0x320] sm:$0xff]
  %v135 = vld [vmem:[%s1 + $0x328] sm:$0xff]
  %v136 = vld [vmem:[%s1 + $0x330] sm:$0xff]
  %v137 = vld [vmem:[%s1 + $0x338] sm:$0xff]
  %v138 = vld [vmem:[%s1 + $0x340] sm:$0xff]
  %v139 = vld [vmem:[%s1 + $0x348] sm:$0xff]
  %v140 = vld [vmem:[%s1 + $0x350] sm:$0xff]
  %v141 = vld [vmem:[%s1 + $0x358] sm:$0xff]
  %v142 = vld [vmem:[%s1 + $0x360] sm:$0xff]
  %v143 = vld [vmem:[%s1 + $0x368] sm:$0xff]
  %v144 = vld [vmem:[%s1 + $0x370] sm:$0xff]
  %v145 = vld [vmem:[%s1 + $0x378] sm:$0xff]
  %v146 = vld [vmem:[%s1 + $0x380] sm:$0xff]
  %v147 = vld [vmem:[%s1 + $0x388] sm:$0xff]
  %v148 = vld [vmem:[%s1 + $0x390] sm:$0xff]
  %v149 = vld [vmem:[%s1 + $0x398] sm:$0xff]
  %v150 = vld [vmem:[%s1 + $0x3a0] sm:$0xff]
  %v151 = vld [vmem:[%s1 + $0x3a8] sm:$0xff]
  %v152 = vld [vmem:[%s1 + $0x3b0] sm:$0xff]
  %v153 = vld [vmem:[%s1 + $0x3b8] sm:$0xff]
  %v154 = vld [vmem:[%s1 + $0x3c0] sm:$0xff]
  %v155 = vld [vmem:[%s1 + $0x3c8] sm:$0xff]
  %v156 = vld [vmem:[%s1 + $0x3d0] sm:$0xff]
  %v157 = vld [vmem:[%s1 + $0x3d8] sm:$0xff]
  %v158 = vld [vmem:[%s1 + $0x3e0] sm:$0xff]
  %v159 = vld [vmem:[%s1 + $0x3e8] sm:$0xff]
  %v160 = vld [vmem:[%s1 + $0x3f0] sm:$0xff]
  %v161 = vld [vmem:[%s1 + $0x3f8] sm:$0xff]
  %v162 = vld [vmem:[%s1 + $0x400] sm:$0xff]
  %v163 = vld [vmem:[%s1 + $0x408] sm:$0xff]
  %v164 = vld [vmem:[%s1 + $0x410] sm:$0xff]
  %v165 = vld [vmem:[%s1 + $0x418] sm:$0xff]
  %v166 = vld [vmem:[%s1 + $0x420] sm:$0xff]
  %v167 = vld [vmem:[%s1 + $0x428] sm:$0xff]
  %v168 = vld [vmem:[%s1 + $0x430] sm:$0xff]
  %v169 = vld [vmem:[%s1 + $0x438] sm:$0xff]
  %v170 = vld [vmem:[%s1 + $0x440] sm:$0xff]
  %v171 = vld [vmem:[%s1 + $0x448] sm:$0xff]
  %v172 = vld [vmem:[%s1 + $0x450] sm:$0xff]
  %v173 = vld [vmem:[%s1 + $0x458] sm:$0xff]
  %v174 = vld [vmem:[%s1 + $0x460] sm:$0xff]
  %v175 = vld [vmem:[%s1 + $0x468] sm:$0xff]
  %v176 = vld [vmem:[%s1 + $0x470] sm:$0xff]
  %v177 = vld [vmem:[%s1 + $0x478] sm:$0xff]
  %v178 = vld [vmem:[%s1 + $0x480] sm:$0xff]
  %v179 = vld [vmem:[%s1 + $0x488] sm:$0xff]
  %v180 = vld [vmem:[%s1 + $0x490] sm:$0xff]
  %v181 = vld [vmem:[%s1 + $0x498] sm:$0xff]
  %v182 = vld [vmem:[%s1 + $0x4a0] sm:$0xff]
  %v183 = vld [vmem:[%s1 + $0x4a8] sm:$0xff]
  %v184 = vld [vmem:[%s1 + $0x4b0] sm:$0xff]
  %v185 = vld [vmem:[%s1 + $0x4b8] sm:$0xff]
  %v186 = vld [vmem:[%s1 + $0x4c0] sm:$0xff]
  %v187 = vld [vmem:[%s1 + $0x4c8] sm:$0xff]
  %v188 = vld [vmem:[%s1 + $0x4d0] sm:$0xff]
  %v189 = vld [vmem:[%s1 + $0x4d8] sm:$0xff]
  %v190 = vld [vmem:[%s1 + $0x4e0] sm:$0xff]
  %v191 = vld [vmem:[%s1 + $0x4e8] sm:$0xff]
  %v192 = vld [vmem:[%s1 + $0x4f0] sm:$0xff]
  %v193 = vld [vmem:[%s1 + $0x4f8] sm:$0xff]
  %v194 = vld [vmem:[%s1 + $0x500] sm:$0xff]
  %v195 = vld [vmem:[%s1 + $0x508] sm:$0xff]
  %v196 = vld [vmem:[%s1 + $0x510] sm:$0xff]
  %v197 = vld [vmem:[%s1 + $0x518] sm:$0xff]
  %v198 = vld [vmem:[%s1 + $0x520] sm:$0xff]
  %v199 = vld [vmem:[%s1 + $0x528] sm:$0xff]
  %v200 = vld [vmem:[%s1 + $0x530] sm:$0xff]
  %v201 = vld [vmem:[%s1 + $0x538] sm:$0xff]
  %v202 = vld [vmem:[%s1 + $0x540] sm:$0xff]
  %v203 = vld [vmem:[%s1 + $0x548] sm:$0xff]
  %v204 = vld [vmem:[%s1 + $0x550] sm:$0xff]
  %v205 = vld [vmem:[%s1 + $0x558] sm:$0xff]
  %v206 = vld [vmem:[%s1 + $0x560] sm:$0xff]
  %v207 = vld [vmem:[%s1 + $0x568] sm:$0xff]
  %v208 = vld [vmem:[%s1 + $0x570] sm:$0xff]
  %v209 = vld [vmem:[%s1 + $0x578] sm:$0xff]
  %v210 = vld [vmem:[%s2] sm:$0x3]
  %v212 = vlaneseq
  %v213 = vshrl.u32 %v212, 7
  %v214 = vsub.s32 0, %v213
  %v215 = vrot.slane %v210, %v214
  %v216 = vlaneseq
  %v217 = vshrl.u32 %v216, 7
  %v218 = vsub.s32 1, %v217
  %v219 = vrot.slane %v210, %v218
  %v234 = vunpack.c.l.b16 %v22
  %v235 = vunpack.c.h.b16 %v22
  %v236 = vunpack.c.l.b16 %v23
  %v237 = vunpack.c.h.b16 %v23
  %v238 = vunpack.c.l.b16 %v24
  %v239 = vunpack.c.h.b16 %v24
  %v240 = vunpack.c.l.b16 %v25
  %v241 = vunpack.c.h.b16 %v25
  %v242 = vunpack.c.l.b16 %v26
  %v243 = vunpack.c.h.b16 %v26
  %v244 = vunpack.c.l.b16 %v27
  %v245 = vunpack.c.l.b16 %v28
  %v246 = vunpack.c.h.b16 %v28
  %v247 = vunpack.c.l.b16 %v29
  %v248 = vunpack.c.h.b16 %v29
  %v249 = vunpack.c.l.b16 %v30
  %v250 = vunpack.c.h.b16 %v30
  %v251 = vunpack.c.l.b16 %v31
  %v252 = vunpack.c.h.b16 %v31
  %v253 = vunpack.c.l.b16 %v32
  %v254 = vunpack.c.h.b16 %v32
  %v255 = vunpack.c.l.b16 %v33
  %v256 = vpack.c.b16 %v245, %v234
  %v257 = vpack.c.b16 %v246, %v235
  %v258 = vpack.c.b16 %v247, %v236
  %v259 = vpack.c.b16 %v248, %v237
  %v260 = vpack.c.b16 %v249, %v238
  %v261 = vpack.c.b16 %v250, %v239
  %v262 = vpack.c.b16 %v251, %v240
  %v263 = vpack.c.b16 %v252, %v241
  %v264 = vpack.c.b16 %v253, %v242
  %v265 = vpack.c.b16 %v254, %v243
  %v266 = vpack.c.b16 %v255, %v244
  %v454 = vunpack.c.l.b16 %v34
  %v455 = vunpack.c.h.b16 %v34
  %v456 = vunpack.c.l.b16 %v35
  %v457 = vunpack.c.h.b16 %v35
  %v458 = vunpack.c.l.b16 %v36
  %v459 = vunpack.c.h.b16 %v36
  %v460 = vunpack.c.l.b16 %v37
  %v461 = vunpack.c.h.b16 %v37
  %v462 = vunpack.c.l.b16 %v38
  %v463 = vunpack.c.h.b16 %v38
  %v464 = vunpack.c.l.b16 %v39
  %v465 = vunpack.c.h.b16 %v39
  %v466 = vunpack.c.l.b16 %v40
  %v467 = vunpack.c.h.b16 %v40
  %v468 = vunpack.c.l.b16 %v41
  %v469 = vunpack.c.h.b16 %v41
  %v470 = vunpack.c.l.b16 %v42
  %v471 = vunpack.c.h.b16 %v42
  %v472 = vunpack.c.l.b16 %v43
  %v473 = vunpack.c.h.b16 %v43
  %v474 = vunpack.c.l.b16 %v44
  %v475 = vunpack.c.h.b16 %v44
  %v476 = vunpack.c.l.b16 %v45
  %v477 = vunpack.c.h.b16 %v45
  %v478 = vunpack.c.l.b16 %v46
  %v479 = vunpack.c.h.b16 %v46
  %v480 = vunpack.c.l.b16 %v47
  %v481 = vunpack.c.h.b16 %v47
  %v482 = vunpack.c.l.b16 %v48
  %v483 = vunpack.c.h.b16 %v48
  %v484 = vunpack.c.l.b16 %v49
  %v485 = vunpack.c.h.b16 %v49
  %v486 = vunpack.c.l.b16 %v50
  %v487 = vunpack.c.h.b16 %v50
  %v488 = vunpack.c.l.b16 %v51
  %v489 = vunpack.c.h.b16 %v51
  %v490 = vunpack.c.l.b16 %v52
  %v491 = vunpack.c.h.b16 %v52
  %v492 = vunpack.c.l.b16 %v53
  %v493 = vunpack.c.h.b16 %v53
  %v494 = vunpack.c.l.b16 %v54
  %v495 = vunpack.c.h.b16 %v54
  %v496 = vunpack.c.l.b16 %v55
  %v497 = vunpack.c.h.b16 %v55
  %v498 = vunpack.c.l.b16 %v56
  %v499 = vunpack.c.h.b16 %v56
  %v500 = vunpack.c.l.b16 %v57
  %v501 = vunpack.c.h.b16 %v57
  %v502 = vunpack.c.l.b16 %v58
  %v503 = vunpack.c.h.b16 %v58
  %v504 = vunpack.c.l.b16 %v59
  %v505 = vunpack.c.h.b16 %v59
  %v506 = vunpack.c.l.b16 %v60
  %v507 = vunpack.c.h.b16 %v60
  %v508 = vunpack.c.l.b16 %v61
  %v509 = vunpack.c.h.b16 %v61
  %v510 = vunpack.c.l.b16 %v62
  %v511 = vunpack.c.h.b16 %v62
  %v512 = vunpack.c.l.b16 %v63
  %v513 = vunpack.c.h.b16 %v63
  %v514 = vunpack.c.l.b16 %v64
  %v515 = vunpack.c.h.b16 %v64
  %v516 = vunpack.c.l.b16 %v65
  %v517 = vunpack.c.h.b16 %v65
  %v518 = vunpack.c.l.b16 %v66
  %v519 = vunpack.c.h.b16 %v66
  %v520 = vunpack.c.l.b16 %v67
  %v521 = vunpack.c.h.b16 %v67
  %v522 = vunpack.c.l.b16 %v68
  %v523 = vunpack.c.h.b16 %v68
  %v524 = vunpack.c.l.b16 %v69
  %v525 = vunpack.c.h.b16 %v69
  %v526 = vunpack.c.l.b16 %v70
  %v527 = vunpack.c.h.b16 %v70
  %v528 = vunpack.c.l.b16 %v71
  %v529 = vunpack.c.h.b16 %v71
  %v530 = vunpack.c.l.b16 %v72
  %v531 = vunpack.c.h.b16 %v72
  %v532 = vunpack.c.l.b16 %v73
  %v533 = vunpack.c.h.b16 %v73
  %v534 = vunpack.c.l.b16 %v74
  %v535 = vunpack.c.h.b16 %v74
  %v536 = vunpack.c.l.b16 %v75
  %v537 = vunpack.c.h.b16 %v75
  %v538 = vunpack.c.l.b16 %v76
  %v539 = vunpack.c.h.b16 %v76
  %v540 = vunpack.c.l.b16 %v77
  %v541 = vunpack.c.h.b16 %v77
  %v542 = vunpack.c.l.b16 %v78
  %v543 = vunpack.c.h.b16 %v78
  %v544 = vunpack.c.l.b16 %v79
  %v545 = vunpack.c.h.b16 %v79
  %v546 = vunpack.c.l.b16 %v80
  %v547 = vunpack.c.h.b16 %v80
  %v548 = vunpack.c.l.b16 %v81
  %v549 = vunpack.c.h.b16 %v81
  %v550 = vunpack.c.l.b16 %v82
  %v551 = vunpack.c.h.b16 %v82
  %v552 = vunpack.c.l.b16 %v83
  %v553 = vunpack.c.h.b16 %v83
  %v554 = vunpack.c.l.b16 %v84
  %v555 = vunpack.c.h.b16 %v84
  %v556 = vunpack.c.l.b16 %v85
  %v557 = vunpack.c.h.b16 %v85
  %v558 = vunpack.c.l.b16 %v86
  %v559 = vunpack.c.h.b16 %v86
  %v560 = vunpack.c.l.b16 %v87
  %v561 = vunpack.c.h.b16 %v87
  %v562 = vunpack.c.l.b16 %v88
  %v563 = vunpack.c.h.b16 %v88
  %v564 = vunpack.c.l.b16 %v89
  %v565 = vunpack.c.h.b16 %v89
  %v566 = vunpack.c.l.b16 %v90
  %v567 = vunpack.c.h.b16 %v90
  %v568 = vunpack.c.l.b16 %v91
  %v569 = vunpack.c.h.b16 %v91
  %v570 = vunpack.c.l.b16 %v92
  %v571 = vunpack.c.h.b16 %v92
  %v572 = vunpack.c.l.b16 %v93
  %v573 = vunpack.c.h.b16 %v93
  %v574 = vunpack.c.l.b16 %v94
  %v575 = vunpack.c.h.b16 %v94
  %v576 = vunpack.c.l.b16 %v95
  %v577 = vunpack.c.h.b16 %v95
  %v578 = vunpack.c.l.b16 %v96
  %v579 = vunpack.c.h.b16 %v96
  %v580 = vunpack.c.l.b16 %v97
  %v581 = vunpack.c.h.b16 %v97
  %v582 = vunpack.c.l.b16 %v98
  %v583 = vunpack.c.h.b16 %v98
  %v584 = vunpack.c.l.b16 %v99
  %v585 = vunpack.c.h.b16 %v99
  %v586 = vunpack.c.l.b16 %v100
  %v587 = vunpack.c.h.b16 %v100
  %v588 = vunpack.c.l.b16 %v101
  %v589 = vunpack.c.h.b16 %v101
  %v590 = vunpack.c.l.b16 %v102
  %v591 = vunpack.c.h.b16 %v102
  %v592 = vunpack.c.l.b16 %v103
  %v593 = vunpack.c.h.b16 %v103
  %v594 = vunpack.c.l.b16 %v104
  %v595 = vunpack.c.h.b16 %v104
  %v596 = vunpack.c.l.b16 %v105
  %v597 = vunpack.c.h.b16 %v105
  %v598 = vunpack.c.l.b16 %v106
  %v599 = vunpack.c.h.b16 %v106
  %v600 = vunpack.c.l.b16 %v107
  %v601 = vunpack.c.h.b16 %v107
  %v602 = vunpack.c.l.b16 %v108
  %v603 = vunpack.c.h.b16 %v108
  %v604 = vunpack.c.l.b16 %v109
  %v605 = vunpack.c.h.b16 %v109
  %v606 = vunpack.c.l.b16 %v110
  %v607 = vunpack.c.h.b16 %v110
  %v608 = vunpack.c.l.b16 %v111
  %v609 = vunpack.c.h.b16 %v111
  %v610 = vunpack.c.l.b16 %v112
  %v611 = vunpack.c.h.b16 %v112
  %v612 = vunpack.c.l.b16 %v113
  %v613 = vunpack.c.h.b16 %v113
  %v614 = vunpack.c.l.b16 %v114
  %v615 = vunpack.c.h.b16 %v114
  %v616 = vunpack.c.l.b16 %v115
  %v617 = vunpack.c.h.b16 %v115
  %v618 = vunpack.c.l.b16 %v116
  %v619 = vunpack.c.h.b16 %v116
  %v620 = vunpack.c.l.b16 %v117
  %v621 = vunpack.c.h.b16 %v117
  %v622 = vunpack.c.l.b16 %v118
  %v623 = vunpack.c.h.b16 %v118
  %v624 = vunpack.c.l.b16 %v119
  %v625 = vunpack.c.h.b16 %v119
  %v626 = vunpack.c.l.b16 %v120
  %v627 = vunpack.c.h.b16 %v120
  %v628 = vunpack.c.l.b16 %v121
  %v629 = vunpack.c.h.b16 %v121
  %v630 = vunpack.c.l.b16 %v122
  %v631 = vunpack.c.h.b16 %v122
  %v632 = vunpack.c.l.b16 %v123
  %v633 = vunpack.c.h.b16 %v123
  %v634 = vunpack.c.l.b16 %v124
  %v635 = vunpack.c.h.b16 %v124
  %v636 = vunpack.c.l.b16 %v125
  %v637 = vunpack.c.h.b16 %v125
  %v638 = vunpack.c.l.b16 %v126
  %v639 = vunpack.c.h.b16 %v126
  %v640 = vunpack.c.l.b16 %v127
  %v641 = vunpack.c.h.b16 %v127
  %v642 = vunpack.c.l.b16 %v128
  %v643 = vunpack.c.h.b16 %v128
  %v644 = vunpack.c.l.b16 %v129
  %v645 = vunpack.c.h.b16 %v129
  %v646 = vunpack.c.l.b16 %v130
  %v647 = vunpack.c.h.b16 %v130
  %v648 = vunpack.c.l.b16 %v131
  %v649 = vunpack.c.h.b16 %v131
  %v650 = vunpack.c.l.b16 %v132
  %v651 = vunpack.c.h.b16 %v132
  %v652 = vunpack.c.l.b16 %v133
  %v653 = vunpack.c.h.b16 %v133
  %v654 = vunpack.c.l.b16 %v134
  %v655 = vunpack.c.h.b16 %v134
  %v656 = vunpack.c.l.b16 %v135
  %v657 = vunpack.c.h.b16 %v135
  %v658 = vunpack.c.l.b16 %v136
  %v659 = vunpack.c.h.b16 %v136
  %v660 = vunpack.c.l.b16 %v137
  %v661 = vunpack.c.h.b16 %v137
  %v662 = vunpack.c.l.b16 %v138
  %v663 = vunpack.c.h.b16 %v138
  %v664 = vunpack.c.l.b16 %v139
  %v665 = vunpack.c.h.b16 %v139
  %v666 = vunpack.c.l.b16 %v140
  %v667 = vunpack.c.h.b16 %v140
  %v668 = vunpack.c.l.b16 %v141
  %v669 = vunpack.c.h.b16 %v141
  %v670 = vunpack.c.l.b16 %v142
  %v671 = vunpack.c.h.b16 %v142
  %v672 = vunpack.c.l.b16 %v143
  %v673 = vunpack.c.h.b16 %v143
  %v674 = vunpack.c.l.b16 %v144
  %v675 = vunpack.c.h.b16 %v144
  %v676 = vunpack.c.l.b16 %v145
  %v677 = vunpack.c.h.b16 %v145
  %v678 = vunpack.c.l.b16 %v146
  %v679 = vunpack.c.h.b16 %v146
  %v680 = vunpack.c.l.b16 %v147
  %v681 = vunpack.c.h.b16 %v147
  %v682 = vunpack.c.l.b16 %v148
  %v683 = vunpack.c.h.b16 %v148
  %v684 = vunpack.c.l.b16 %v149
  %v685 = vunpack.c.h.b16 %v149
  %v686 = vunpack.c.l.b16 %v150
  %v687 = vunpack.c.h.b16 %v150
  %v688 = vunpack.c.l.b16 %v151
  %v689 = vunpack.c.h.b16 %v151
  %v690 = vunpack.c.l.b16 %v152
  %v691 = vunpack.c.h.b16 %v152
  %v692 = vunpack.c.l.b16 %v153
  %v693 = vunpack.c.h.b16 %v153
  %v694 = vunpack.c.l.b16 %v154
  %v695 = vunpack.c.h.b16 %v154
  %v696 = vunpack.c.l.b16 %v155
  %v697 = vunpack.c.h.b16 %v155
  %v698 = vunpack.c.l.b16 %v156
  %v699 = vunpack.c.h.b16 %v156
  %v700 = vunpack.c.l.b16 %v157
  %v701 = vunpack.c.h.b16 %v157
  %v702 = vunpack.c.l.b16 %v158
  %v703 = vunpack.c.h.b16 %v158
  %v704 = vunpack.c.l.b16 %v159
  %v705 = vunpack.c.h.b16 %v159
  %v706 = vunpack.c.l.b16 %v160
  %v707 = vunpack.c.h.b16 %v160
  %v708 = vunpack.c.l.b16 %v161
  %v709 = vunpack.c.h.b16 %v161
  %v710 = vunpack.c.l.b16 %v162
  %v711 = vunpack.c.h.b16 %v162
  %v712 = vunpack.c.l.b16 %v163
  %v713 = vunpack.c.h.b16 %v163
  %v714 = vunpack.c.l.b16 %v164
  %v715 = vunpack.c.h.b16 %v164
  %v716 = vunpack.c.l.b16 %v165
  %v717 = vunpack.c.h.b16 %v165
  %v718 = vunpack.c.l.b16 %v166
  %v719 = vunpack.c.h.b16 %v166
  %v720 = vunpack.c.l.b16 %v167
  %v721 = vunpack.c.h.b16 %v167
  %v722 = vunpack.c.l.b16 %v168
  %v723 = vunpack.c.h.b16 %v168
  %v724 = vunpack.c.l.b16 %v169
  %v725 = vunpack.c.h.b16 %v169
  %v726 = vunpack.c.l.b16 %v170
  %v727 = vunpack.c.h.b16 %v170
  %v728 = vunpack.c.l.b16 %v171
  %v729 = vunpack.c.h.b16 %v171
  %v730 = vunpack.c.l.b16 %v172
  %v731 = vunpack.c.h.b16 %v172
  %v732 = vunpack.c.l.b16 %v173
  %v733 = vunpack.c.h.b16 %v173
  %v734 = vunpack.c.l.b16 %v174
  %v735 = vunpack.c.h.b16 %v174
  %v736 = vunpack.c.l.b16 %v175
  %v737 = vunpack.c.h.b16 %v175
  %v738 = vunpack.c.l.b16 %v176
  %v739 = vunpack.c.h.b16 %v176
  %v740 = vunpack.c.l.b16 %v177
  %v741 = vunpack.c.h.b16 %v177
  %v742 = vunpack.c.l.b16 %v178
  %v743 = vunpack.c.h.b16 %v178
  %v744 = vunpack.c.l.b16 %v179
  %v745 = vunpack.c.h.b16 %v179
  %v746 = vunpack.c.l.b16 %v180
  %v747 = vunpack.c.h.b16 %v180
  %v748 = vunpack.c.l.b16 %v181
  %v749 = vunpack.c.h.b16 %v181
  %v750 = vunpack.c.l.b16 %v182
  %v751 = vunpack.c.h.b16 %v182
  %v752 = vunpack.c.l.b16 %v183
  %v753 = vunpack.c.h.b16 %v183
  %v754 = vunpack.c.l.b16 %v184
  %v755 = vunpack.c.h.b16 %v184
  %v756 = vunpack.c.l.b16 %v185
  %v757 = vunpack.c.h.b16 %v185
  %v758 = vunpack.c.l.b16 %v186
  %v759 = vunpack.c.h.b16 %v186
  %v760 = vunpack.c.l.b16 %v187
  %v761 = vunpack.c.h.b16 %v187
  %v762 = vunpack.c.l.b16 %v188
  %v763 = vunpack.c.h.b16 %v188
  %v764 = vunpack.c.l.b16 %v189
  %v765 = vunpack.c.h.b16 %v189
  %v766 = vunpack.c.l.b16 %v190
  %v767 = vunpack.c.h.b16 %v190
  %v768 = vunpack.c.l.b16 %v191
  %v769 = vunpack.c.h.b16 %v191
  %v770 = vunpack.c.l.b16 %v192
  %v771 = vunpack.c.h.b16 %v192
  %v772 = vunpack.c.l.b16 %v193
  %v773 = vunpack.c.h.b16 %v193
  %v774 = vunpack.c.l.b16 %v194
  %v775 = vunpack.c.h.b16 %v194
  %v776 = vunpack.c.l.b16 %v195
  %v777 = vunpack.c.h.b16 %v195
  %v778 = vunpack.c.l.b16 %v196
  %v779 = vunpack.c.h.b16 %v196
  %v780 = vunpack.c.l.b16 %v197
  %v781 = vunpack.c.h.b16 %v197
  %v782 = vunpack.c.l.b16 %v198
  %v783 = vunpack.c.h.b16 %v198
  %v784 = vunpack.c.l.b16 %v199
  %v785 = vunpack.c.h.b16 %v199
  %v786 = vunpack.c.l.b16 %v200
  %v787 = vunpack.c.h.b16 %v200
  %v788 = vunpack.c.l.b16 %v201
  %v789 = vunpack.c.h.b16 %v201
  %v790 = vunpack.c.l.b16 %v202
  %v791 = vunpack.c.h.b16 %v202
  %v792 = vunpack.c.l.b16 %v203
  %v793 = vunpack.c.h.b16 %v203
  %v794 = vunpack.c.l.b16 %v204
  %v795 = vunpack.c.h.b16 %v204
  %v796 = vunpack.c.l.b16 %v205
  %v797 = vunpack.c.h.b16 %v205
  %v798 = vunpack.c.l.b16 %v206
  %v799 = vunpack.c.h.b16 %v206
  %v800 = vunpack.c.l.b16 %v207
  %v801 = vunpack.c.h.b16 %v207
  %v802 = vunpack.c.l.b16 %v208
  %v803 = vunpack.c.h.b16 %v208
  %v804 = vunpack.c.l.b16 %v209
  %v805 = vunpack.c.h.b16 %v209
  %v806 = vpack.c.b16 %v456, %v454
  %v807 = vpack.c.b16 %v457, %v455
  %v808 = vpack.c.b16 %v460, %v458
  %v809 = vpack.c.b16 %v461, %v459
  %v810 = vpack.c.b16 %v464, %v462
  %v811 = vpack.c.b16 %v465, %v463
  %v812 = vpack.c.b16 %v468, %v466
  %v813 = vpack.c.b16 %v469, %v467
  %v814 = vpack.c.b16 %v472, %v470
  %v815 = vpack.c.b16 %v473, %v471
  %v816 = vpack.c.b16 %v476, %v474
  %v817 = vpack.c.b16 %v477, %v475
  %v818 = vpack.c.b16 %v480, %v478
  %v819 = vpack.c.b16 %v481, %v479
  %v820 = vpack.c.b16 %v484, %v482
  %v821 = vpack.c.b16 %v485, %v483
  %v822 = vpack.c.b16 %v488, %v486
  %v823 = vpack.c.b16 %v489, %v487
  %v824 = vpack.c.b16 %v492, %v490
  %v825 = vpack.c.b16 %v493, %v491
  %v826 = vpack.c.b16 %v496, %v494
  %v827 = vpack.c.b16 %v497, %v495
  %v828 = vpack.c.b16 %v500, %v498
  %v829 = vpack.c.b16 %v501, %v499
  %v830 = vpack.c.b16 %v504, %v502
  %v831 = vpack.c.b16 %v505, %v503
  %v832 = vpack.c.b16 %v508, %v506
  %v833 = vpack.c.b16 %v509, %v507
  %v834 = vpack.c.b16 %v512, %v510
  %v835 = vpack.c.b16 %v513, %v511
  %v836 = vpack.c.b16 %v516, %v514
  %v837 = vpack.c.b16 %v517, %v515
  %v838 = vpack.c.b16 %v520, %v518
  %v839 = vpack.c.b16 %v521, %v519
  %v840 = vpack.c.b16 %v524, %v522
  %v841 = vpack.c.b16 %v525, %v523
  %v842 = vpack.c.b16 %v528, %v526
  %v843 = vpack.c.b16 %v529, %v527
  %v844 = vpack.c.b16 %v532, %v530
  %v845 = vpack.c.b16 %v533, %v531
  %v846 = vpack.c.b16 %v536, %v534
  %v847 = vpack.c.b16 %v537, %v535
  %v848 = vpack.c.b16 %v540, %v538
  %v849 = vpack.c.b16 %v541, %v539
  %v850 = vpack.c.b16 %v544, %v542
  %v851 = vpack.c.b16 %v545, %v543
  %v852 = vpack.c.b16 %v548, %v546
  %v853 = vpack.c.b16 %v549, %v547
  %v854 = vpack.c.b16 %v552, %v550
  %v855 = vpack.c.b16 %v553, %v551
  %v856 = vpack.c.b16 %v556, %v554
  %v857 = vpack.c.b16 %v557, %v555
  %v858 = vpack.c.b16 %v560, %v558
  %v859 = vpack.c.b16 %v561, %v559
  %v860 = vpack.c.b16 %v564, %v562
  %v861 = vpack.c.b16 %v565, %v563
  %v862 = vpack.c.b16 %v568, %v566
  %v863 = vpack.c.b16 %v569, %v567
  %v864 = vpack.c.b16 %v572, %v570
  %v865 = vpack.c.b16 %v573, %v571
  %v866 = vpack.c.b16 %v576, %v574
  %v867 = vpack.c.b16 %v577, %v575
  %v868 = vpack.c.b16 %v580, %v578
  %v869 = vpack.c.b16 %v581, %v579
  %v870 = vpack.c.b16 %v584, %v582
  %v871 = vpack.c.b16 %v585, %v583
  %v872 = vpack.c.b16 %v588, %v586
  %v873 = vpack.c.b16 %v589, %v587
  %v874 = vpack.c.b16 %v592, %v590
  %v875 = vpack.c.b16 %v593, %v591
  %v876 = vpack.c.b16 %v596, %v594
  %v877 = vpack.c.b16 %v597, %v595
  %v878 = vpack.c.b16 %v600, %v598
  %v879 = vpack.c.b16 %v601, %v599
  %v880 = vpack.c.b16 %v604, %v602
  %v881 = vpack.c.b16 %v605, %v603
  %v882 = vpack.c.b16 %v608, %v606
  %v883 = vpack.c.b16 %v609, %v607
  %v884 = vpack.c.b16 %v612, %v610
  %v885 = vpack.c.b16 %v613, %v611
  %v886 = vpack.c.b16 %v616, %v614
  %v887 = vpack.c.b16 %v617, %v615
  %v888 = vpack.c.b16 %v620, %v618
  %v889 = vpack.c.b16 %v621, %v619
  %v890 = vpack.c.b16 %v624, %v622
  %v891 = vpack.c.b16 %v625, %v623
  %v892 = vpack.c.b16 %v628, %v626
  %v893 = vpack.c.b16 %v629, %v627
  %v894 = vpack.c.b16 %v632, %v630
  %v895 = vpack.c.b16 %v633, %v631
  %v896 = vpack.c.b16 %v636, %v634
  %v897 = vpack.c.b16 %v637, %v635
  %v898 = vpack.c.b16 %v640, %v638
  %v899 = vpack.c.b16 %v641, %v639
  %v900 = vpack.c.b16 %v644, %v642
  %v901 = vpack.c.b16 %v645, %v643
  %v902 = vpack.c.b16 %v648, %v646
  %v903 = vpack.c.b16 %v649, %v647
  %v904 = vpack.c.b16 %v652, %v650
  %v905 = vpack.c.b16 %v653, %v651
  %v906 = vpack.c.b16 %v656, %v654
  %v907 = vpack.c.b16 %v657, %v655
  %v908 = vpack.c.b16 %v660, %v658
  %v909 = vpack.c.b16 %v661, %v659
  %v910 = vpack.c.b16 %v664, %v662
  %v911 = vpack.c.b16 %v665, %v663
  %v912 = vpack.c.b16 %v668, %v666
  %v913 = vpack.c.b16 %v669, %v667
  %v914 = vpack.c.b16 %v672, %v670
  %v915 = vpack.c.b16 %v673, %v671
  %v916 = vpack.c.b16 %v676, %v674
  %v917 = vpack.c.b16 %v677, %v675
  %v918 = vpack.c.b16 %v680, %v678
  %v919 = vpack.c.b16 %v681, %v679
  %v920 = vpack.c.b16 %v684, %v682
  %v921 = vpack.c.b16 %v685, %v683
  %v922 = vpack.c.b16 %v688, %v686
  %v923 = vpack.c.b16 %v689, %v687
  %v924 = vpack.c.b16 %v692, %v690
  %v925 = vpack.c.b16 %v693, %v691
  %v926 = vpack.c.b16 %v696, %v694
  %v927 = vpack.c.b16 %v697, %v695
  %v928 = vpack.c.b16 %v700, %v698
  %v929 = vpack.c.b16 %v701, %v699
  %v930 = vpack.c.b16 %v704, %v702
  %v931 = vpack.c.b16 %v705, %v703
  %v932 = vpack.c.b16 %v708, %v706
  %v933 = vpack.c.b16 %v709, %v707
  %v934 = vpack.c.b16 %v712, %v710
  %v935 = vpack.c.b16 %v713, %v711
  %v936 = vpack.c.b16 %v716, %v714
  %v937 = vpack.c.b16 %v717, %v715
  %v938 = vpack.c.b16 %v720, %v718
  %v939 = vpack.c.b16 %v721, %v719
  %v940 = vpack.c.b16 %v724, %v722
  %v941 = vpack.c.b16 %v725, %v723
  %v942 = vpack.c.b16 %v728, %v726
  %v943 = vpack.c.b16 %v729, %v727
  %v944 = vpack.c.b16 %v732, %v730
  %v945 = vpack.c.b16 %v733, %v731
  %v946 = vpack.c.b16 %v736, %v734
  %v947 = vpack.c.b16 %v737, %v735
  %v948 = vpack.c.b16 %v740, %v738
  %v949 = vpack.c.b16 %v741, %v739
  %v950 = vpack.c.b16 %v744, %v742
  %v951 = vpack.c.b16 %v745, %v743
  %v952 = vpack.c.b16 %v748, %v746
  %v953 = vpack.c.b16 %v749, %v747
  %v954 = vpack.c.b16 %v752, %v750
  %v955 = vpack.c.b16 %v753, %v751
  %v956 = vpack.c.b16 %v756, %v754
  %v957 = vpack.c.b16 %v757, %v755
  %v958 = vpack.c.b16 %v760, %v758
  %v959 = vpack.c.b16 %v761, %v759
  %v960 = vpack.c.b16 %v764, %v762
  %v961 = vpack.c.b16 %v765, %v763
  %v962 = vpack.c.b16 %v768, %v766
  %v963 = vpack.c.b16 %v769, %v767
  %v964 = vpack.c.b16 %v772, %v770
  %v965 = vpack.c.b16 %v773, %v771
  %v966 = vpack.c.b16 %v776, %v774
  %v967 = vpack.c.b16 %v777, %v775
  %v968 = vpack.c.b16 %v780, %v778
  %v969 = vpack.c.b16 %v781, %v779
  %v970 = vpack.c.b16 %v784, %v782
  %v971 = vpack.c.b16 %v785, %v783
  %v972 = vpack.c.b16 %v788, %v786
  %v973 = vpack.c.b16 %v789, %v787
  %v974 = vpack.c.b16 %v792, %v790
  %v975 = vpack.c.b16 %v793, %v791
  %v976 = vpack.c.b16 %v796, %v794
  %v977 = vpack.c.b16 %v797, %v795
  %v978 = vpack.c.b16 %v800, %v798
  %v979 = vpack.c.b16 %v801, %v799
  %v980 = vpack.c.b16 %v804, %v802
  %v981 = vpack.c.b16 %v805, %v803
  %1158 = vmatprep.subr.bf16.mxu0 %v821
  %1159 = vmatpush1.bf16.msra.mxu0 %v820
  %1160 = vmatprep.subr.bf16.mxu0 %v819
  %1161 = vmatpush1.bf16.msra.mxu0 %v818
  %1162 = vmatprep.subr.bf16.mxu0 %v817
  %1163 = vmatpush1.bf16.msra.mxu0 %v816
  %1164 = vmatprep.subr.bf16.mxu0 %v815
  %1165 = vmatpush1.bf16.msra.mxu0 %v814
  %1166 = vmatprep.subr.bf16.mxu0 %v813
  %1167 = vmatpush1.bf16.msra.mxu0 %v812
  %1168 = vmatprep.subr.bf16.mxu0 %v811
  %1169 = vmatpush1.bf16.msra.mxu0 %v810
  %1170 = vmatprep.subr.bf16.mxu0 %v809
  %1171 = vmatpush1.bf16.msra.mxu0 %v808
  %1172 = vmatprep.subr.bf16.mxu0 %v807
  %1173 = vmatpush1.bf16.msra.mxu0 %v806
  %1174 = vmatprep.subr.bf16.mxu0 %v837
  %1175 = vmatpush2.bf16.msra.mxu0 %v836
  %1176 = vmatprep.subr.bf16.mxu0 %v835
  %1177 = vmatpush2.bf16.msra.mxu0 %v834
  %1178 = vmatprep.subr.bf16.mxu0 %v833
  %1179 = vmatpush2.bf16.msra.mxu0 %v832
  %1180 = vmatprep.subr.bf16.mxu0 %v831
  %1181 = vmatpush2.bf16.msra.mxu0 %v830
  %1182 = vmatprep.subr.bf16.mxu0 %v829
  %1183 = vmatpush2.bf16.msra.mxu0 %v828
  %1184 = vmatprep.subr.bf16.mxu0 %v827
  %1185 = vmatpush2.bf16.msra.mxu0 %v826
  %1186 = vmatprep.subr.bf16.mxu0 %v825
  %1187 = vmatpush2.bf16.msra.mxu0 %v824
  %1188 = vmatprep.subr.bf16.mxu0 %v823
  %1189 = vmatpush2.bf16.msra.mxu0 %v822
  %1190 = vmatprep.mubr.bf16.mxu0 %v257
  %1191 = vmatmul.mubr.bf16.gmra.mxu0 %v256
  %v1192 = vpop.f32.mrf.mxu0
  %v1193 = vadd.f32 %v215, %v1192
  %v1194 = vpop.f32.mrf.mxu0
  %v1195 = vadd.f32 %v219, %v1194
  %v1196 = vpop.f32.mrf.mxu0
  %v1197 = vadd.f32 %v215, %v1196
  %v1198 = vpop.f32.mrf.mxu0
  %v1199 = vadd.f32 %v219, %v1198
  %1200 = vdwg.mxu0
  %1201 = vmatprep.subr.bf16.mxu0 %v853
  %1202 = vmatpush1.bf16.msra.mxu0 %v852
  %1203 = vmatprep.subr.bf16.mxu0 %v851
  %1204 = vmatpush1.bf16.msra.mxu0 %v850
  %1205 = vmatprep.subr.bf16.mxu0 %v849
  %1206 = vmatpush1.bf16.msra.mxu0 %v848
  %1207 = vmatprep.subr.bf16.mxu0 %v847
  %1208 = vmatpush1.bf16.msra.mxu0 %v846
  %1209 = vmatprep.subr.bf16.mxu0 %v845
  %1210 = vmatpush1.bf16.msra.mxu0 %v844
  %1211 = vmatprep.subr.bf16.mxu0 %v843
  %1212 = vmatpush1.bf16.msra.mxu0 %v842
  %1213 = vmatprep.subr.bf16.mxu0 %v841
  %1214 = vmatpush1.bf16.msra.mxu0 %v840
  %1215 = vmatprep.subr.bf16.mxu0 %v839
  %1216 = vmatpush1.bf16.msra.mxu0 %v838
  %1217 = vmatprep.subr.bf16.mxu0 %v869
  %1218 = vmatpush2.bf16.msra.mxu0 %v868
  %1219 = vmatprep.subr.bf16.mxu0 %v867
  %1220 = vmatpush2.bf16.msra.mxu0 %v866
  %1221 = vmatprep.subr.bf16.mxu0 %v865
  %1222 = vmatpush2.bf16.msra.mxu0 %v864
  %1223 = vmatprep.subr.bf16.mxu0 %v863
  %1224 = vmatpush2.bf16.msra.mxu0 %v862
  %1225 = vmatprep.subr.bf16.mxu0 %v861
  %1226 = vmatpush2.bf16.msra.mxu0 %v860
  %1227 = vmatprep.subr.bf16.mxu0 %v859
  %1228 = vmatpush2.bf16.msra.mxu0 %v858
  %1229 = vmatprep.subr.bf16.mxu0 %v857
  %1230 = vmatpush2.bf16.msra.mxu0 %v856
  %1231 = vmatprep.subr.bf16.mxu0 %v855
  %1232 = vmatpush2.bf16.msra.mxu0 %v854
  %1233 = vmatprep.mubr.bf16.mxu0 %v259
  %1234 = vmatmul.mubr.bf16.gmra.mxu0 %v258
  %v1235 = vpop.f32.mrf.mxu0
  %v1236 = vadd.f32 %v1193, %v1235
  %v1237 = vpop.f32.mrf.mxu0
  %v1238 = vadd.f32 %v1195, %v1237
  %v1239 = vpop.f32.mrf.mxu0
  %v1240 = vadd.f32 %v1197, %v1239
  %v1241 = vpop.f32.mrf.mxu0
  %v1242 = vadd.f32 %v1199, %v1241
  %1243 = vdwg.mxu0
  %1244 = vmatprep.subr.bf16.mxu0 %v885
  %1245 = vmatpush1.bf16.msra.mxu0 %v884
  %1246 = vmatprep.subr.bf16.mxu0 %v883
  %1247 = vmatpush1.bf16.msra.mxu0 %v882
  %1248 = vmatprep.subr.bf16.mxu0 %v881
  %1249 = vmatpush1.bf16.msra.mxu0 %v880
  %1250 = vmatprep.subr.bf16.mxu0 %v879
  %1251 = vmatpush1.bf16.msra.mxu0 %v878
  %1252 = vmatprep.subr.bf16.mxu0 %v877
  %1253 = vmatpush1.bf16.msra.mxu0 %v876
  %1254 = vmatprep.subr.bf16.mxu0 %v875
  %1255 = vmatpush1.bf16.msra.mxu0 %v874
  %1256 = vmatprep.subr.bf16.mxu0 %v873
  %1257 = vmatpush1.bf16.msra.mxu0 %v872
  %1258 = vmatprep.subr.bf16.mxu0 %v871
  %1259 = vmatpush1.bf16.msra.mxu0 %v870
  %1260 = vmatprep.subr.bf16.mxu0 %v901
  %1261 = vmatpush2.bf16.msra.mxu0 %v900
  %1262 = vmatprep.subr.bf16.mxu0 %v899
  %1263 = vmatpush2.bf16.msra.mxu0 %v898
  %1264 = vmatprep.subr.bf16.mxu0 %v897
  %1265 = vmatpush2.bf16.msra.mxu0 %v896
  %1266 = vmatprep.subr.bf16.mxu0 %v895
  %1267 = vmatpush2.bf16.msra.mxu0 %v894
  %1268 = vmatprep.subr.bf16.mxu0 %v893
  %1269 = vmatpush2.bf16.msra.mxu0 %v892
  %1270 = vmatprep.subr.bf16.mxu0 %v891
  %1271 = vmatpush2.bf16.msra.mxu0 %v890
  %1272 = vmatprep.subr.bf16.mxu0 %v889
  %1273 = vmatpush2.bf16.msra.mxu0 %v888
  %1274 = vmatprep.subr.bf16.mxu0 %v887
  %1275 = vmatpush2.bf16.msra.mxu0 %v886
  %1276 = vmatprep.mubr.bf16.mxu0 %v261
  %1277 = vmatmul.mubr.bf16.gmra.mxu0 %v260
  %v1278 = vpop.f32.mrf.mxu0
  %v1279 = vadd.f32 %v1236, %v1278
  %v1280 = vpop.f32.mrf.mxu0
  %v1281 = vadd.f32 %v1238, %v1280
  %v1282 = vpop.f32.mrf.mxu0
  %v1283 = vadd.f32 %v1240, %v1282
  %v1284 = vpop.f32.mrf.mxu0
  %v1285 = vadd.f32 %v1242, %v1284
  %1286 = vdwg.mxu0
  %1287 = vmatprep.subr.bf16.mxu0 %v917
  %1288 = vmatpush1.bf16.msra.mxu0 %v916
  %1289 = vmatprep.subr.bf16.mxu0 %v915
  %1290 = vmatpush1.bf16.msra.mxu0 %v914
  %1291 = vmatprep.subr.bf16.mxu0 %v913
  %1292 = vmatpush1.bf16.msra.mxu0 %v912
  %1293 = vmatprep.subr.bf16.mxu0 %v911
  %1294 = vmatpush1.bf16.msra.mxu0 %v910
  %1295 = vmatprep.subr.bf16.mxu0 %v909
  %1296 = vmatpush1.bf16.msra.mxu0 %v908
  %1297 = vmatprep.subr.bf16.mxu0 %v907
  %1298 = vmatpush1.bf16.msra.mxu0 %v906
  %1299 = vmatprep.subr.bf16.mxu0 %v905
  %1300 = vmatpush1.bf16.msra.mxu0 %v904
  %1301 = vmatprep.subr.bf16.mxu0 %v903
  %1302 = vmatpush1.bf16.msra.mxu0 %v902
  %1303 = vmatprep.subr.bf16.mxu0 %v933
  %1304 = vmatpush2.bf16.msra.mxu0 %v932
  %1305 = vmatprep.subr.bf16.mxu0 %v931
  %1306 = vmatpush2.bf16.msra.mxu0 %v930
  %1307 = vmatprep.subr.bf16.mxu0 %v929
  %1308 = vmatpush2.bf16.msra.mxu0 %v928
  %1309 = vmatprep.subr.bf16.mxu0 %v927
  %1310 = vmatpush2.bf16.msra.mxu0 %v926
  %1311 = vmatprep.subr.bf16.mxu0 %v925
  %1312 = vmatpush2.bf16.msra.mxu0 %v924
  %1313 = vmatprep.subr.bf16.mxu0 %v923
  %1314 = vmatpush2.bf16.msra.mxu0 %v922
  %1315 = vmatprep.subr.bf16.mxu0 %v921
  %1316 = vmatpush2.bf16.msra.mxu0 %v920
  %1317 = vmatprep.subr.bf16.mxu0 %v919
  %1318 = vmatpush2.bf16.msra.mxu0 %v918
  %1319 = vmatprep.mubr.bf16.mxu0 %v263
  %1320 = vmatmul.mubr.bf16.gmra.mxu0 %v262
  %v1321 = vpop.f32.mrf.mxu0
  %v1322 = vadd.f32 %v1279, %v1321
  %v1323 = vpop.f32.mrf.mxu0
  %v1324 = vadd.f32 %v1281, %v1323
  %v1325 = vpop.f32.mrf.mxu0
  %v1326 = vadd.f32 %v1283, %v1325
  %v1327 = vpop.f32.mrf.mxu0
  %v1328 = vadd.f32 %v1285, %v1327
  %1329 = vdwg.mxu0
  %1330 = vmatprep.subr.bf16.mxu0 %v949
  %1331 = vmatpush1.bf16.msra.mxu0 %v948
  %1332 = vmatprep.subr.bf16.mxu0 %v947
  %1333 = vmatpush1.bf16.msra.mxu0 %v946
  %1334 = vmatprep.subr.bf16.mxu0 %v945
  %1335 = vmatpush1.bf16.msra.mxu0 %v944
  %1336 = vmatprep.subr.bf16.mxu0 %v943
  %1337 = vmatpush1.bf16.msra.mxu0 %v942
  %1338 = vmatprep.subr.bf16.mxu0 %v941
  %1339 = vmatpush1.bf16.msra.mxu0 %v940
  %1340 = vmatprep.subr.bf16.mxu0 %v939
  %1341 = vmatpush1.bf16.msra.mxu0 %v938
  %1342 = vmatprep.subr.bf16.mxu0 %v937
  %1343 = vmatpush1.bf16.msra.mxu0 %v936
  %1344 = vmatprep.subr.bf16.mxu0 %v935
  %1345 = vmatpush1.bf16.msra.mxu0 %v934
  %1346 = vmatprep.subr.bf16.mxu0 %v965
  %1347 = vmatpush2.bf16.msra.mxu0 %v964
  %1348 = vmatprep.subr.bf16.mxu0 %v963
  %1349 = vmatpush2.bf16.msra.mxu0 %v962
  %1350 = vmatprep.subr.bf16.mxu0 %v961
  %1351 = vmatpush2.bf16.msra.mxu0 %v960
  %1352 = vmatprep.subr.bf16.mxu0 %v959
  %1353 = vmatpush2.bf16.msra.mxu0 %v958
  %1354 = vmatprep.subr.bf16.mxu0 %v957
  %1355 = vmatpush2.bf16.msra.mxu0 %v956
  %1356 = vmatprep.subr.bf16.mxu0 %v955
  %1357 = vmatpush2.bf16.msra.mxu0 %v954
  %1358 = vmatprep.subr.bf16.mxu0 %v953
  %1359 = vmatpush2.bf16.msra.mxu0 %v952
  %1360 = vmatprep.subr.bf16.mxu0 %v951
  %1361 = vmatpush2.bf16.msra.mxu0 %v950
  %1362 = vmatprep.mubr.bf16.mxu0 %v265
  %1363 = vmatmul.mubr.bf16.gmra.mxu0 %v264
  %v1364 = vpop.f32.mrf.mxu0
  %v1365 = vadd.f32 %v1322, %v1364
  %v1366 = vpop.f32.mrf.mxu0
  %v1367 = vadd.f32 %v1324, %v1366
  %v1368 = vpop.f32.mrf.mxu0
  %v1369 = vadd.f32 %v1326, %v1368
  %v1370 = vpop.f32.mrf.mxu0
  %v1371 = vadd.f32 %v1328, %v1370
  %1372 = vdwg.mxu0
  %1373 = vmatprep.subr.bf16.mxu0 %v981
  %1374 = vmatpush1.bf16.msra.mxu0 %v980
  %1375 = vmatprep.subr.bf16.mxu0 %v979
  %1376 = vmatpush1.bf16.msra.mxu0 %v978
  %1377 = vmatprep.subr.bf16.mxu0 %v977
  %1378 = vmatpush1.bf16.msra.mxu0 %v976
  %1379 = vmatprep.subr.bf16.mxu0 %v975
  %1380 = vmatpush1.bf16.msra.mxu0 %v974
  %1381 = vmatprep.subr.bf16.mxu0 %v973
  %1382 = vmatpush1.bf16.msra.mxu0 %v972
  %1383 = vmatprep.subr.bf16.mxu0 %v971
  %1384 = vmatpush1.bf16.msra.mxu0 %v970
  %1385 = vmatprep.subr.bf16.mxu0 %v969
  %1386 = vmatpush1.bf16.msra.mxu0 %v968
  %1387 = vmatprep.subr.bf16.mxu0 %v967
  %1388 = vmatpush1.bf16.msra.mxu0 %v966
  %1389 = vmatprep.subr.bf16.mxu0 0
  %1390 = vmatpush2.bf16.msra.mxu0 0
  %1391 = vmatprep.subr.bf16.mxu0 0
  %1392 = vmatpush2.bf16.msra.mxu0 0
  %1393 = vmatprep.subr.bf16.mxu0 0
  %1394 = vmatpush2.bf16.msra.mxu0 0
  %1395 = vmatprep.subr.bf16.mxu0 0
  %1396 = vmatpush2.bf16.msra.mxu0 0
  %1397 = vmatprep.subr.bf16.mxu0 0
  %1398 = vmatpush2.bf16.msra.mxu0 0
  %1399 = vmatprep.subr.bf16.mxu0 0
  %1400 = vmatpush2.bf16.msra.mxu0 0
  %1401 = vmatprep.subr.bf16.mxu0 0
  %1402 = vmatpush2.bf16.msra.mxu0 0
  %1403 = vmatprep.subr.bf16.mxu0 0
  %1404 = vmatpush2.bf16.msra.mxu0 0
  %1405 = vmatprep.mubr.bf16.mxu0 0
  %1406 = vmatmul.mubr.bf16.gmra.mxu0 %v266
  %v1407 = vpop.f32.mrf.mxu0
  %v1408 = vadd.f32 %v1365, %v1407
  %v1409 = vpop.f32.mrf.mxu0
  %v1410 = vadd.f32 %v1367, %v1409
  %v1411 = vpop.f32.mrf.mxu0
  %v1412 = vadd.f32 %v1369, %v1411
  %v1413 = vpop.f32.mrf.mxu0
  %v1414 = vadd.f32 %v1371, %v1413
  %1415 = vdwg.mxu0
  %v1416 = vmax.f32 %v1408, 0.0
  %v1417 = vmax.f32 %v1410, 0.0
  %v1418 = vmax.f32 %v1412, 0.0
  %v1419 = vmax.f32 %v1414, 0.0
  %v1420 = vld [vmem:[%s3] sm:$0x3]
  %v1422 = vlaneseq
  %v1423 = vshrl.u32 %v1422, 7
  %v1424 = vsub.s32 0, %v1423
  %v1425 = vrot.slane %v1420, %v1424
  %v1426 = vlaneseq
  %v1427 = vshrl.u32 %v1426, 7
  %v1428 = vsub.s32 1, %v1427
  %v1429 = vrot.slane %v1420, %v1428
  %v1432 = vmul.f32 %v1416, %v1425
  %v1433 = vmul.f32 %v1417, %v1429
  %v1434 = vmul.f32 %v1418, %v1425
  %v1435 = vmul.f32 %v1419, %v1429
  %vm1436 = vcmask 523264
  %v1437 = vsel %vm1436, %v1433, 0.0
  %v1438 = vadd.f32 %v1432, %v1437
  %1439 = vadd.xlane.f32.xlu0 %v1438
  %v1440 = vpop.xlane.xlu0 %1439
  %v1441 = vsel %vm1436, %v1435, 0.0
  %v1442 = vadd.f32 %v1434, %v1441
  %1443 = vadd.xlane.f32.xlu0 %v1442
  %v1444 = vpop.xlane.xlu0 %1443
  %s1445 = sld [smem:[#allocation2]]
  %v1446 = vstv %s1445
  %v1447 = vadd.f32 %v1440, %v1446
  %v1448 = vadd.f32 %v1444, %v1446
  %v1449 = vmax.f32 %v1447, 0.0
  %v1450 = vmax.f32 %v1448, 0.0
  %vm1451 = vcmask 7168
  %1452 = vst.msk [vmem:[%s5] sm:$0xff] %vm1451, %v1449
  %1453 = vst.msk [vmem:[%s5 + $0x8] sm:$0xff] %vm1451, %v1450
  // Predicated region
  $region22: #{tpu_custom_call.1} parent=0 // pred_check
    _
  $region23: #{tpu_custom_call.1} parent=0 // pred_check_branch
    %1455 = sbr.rel (0) target = $region25
  $region24: #{tpu_custom_call.1} parent=0 // pred_region
    _
  $region25: #{tpu_custom_call.1} parent=0 // pred_fallthru
    _
  // Predicated region
  $region26: #{tpu_custom_call.1} parent=0 // pred_check
    _
  $region27: #{tpu_custom_call.1} parent=0 // pred_check_branch
    %1457 = sbr.rel (0) target = $region29
  $region28: #{tpu_custom_call.1} parent=0 // pred_region
    _
  $region29: #{tpu_custom_call.1} parent=0 // pred_fallthru
    _

</llo_original>
